<compile_context>
chip_gen: v7x
topology: tpu7x:2x2x1
jax: 0.10.0
libtpu: 0.0.40
codegen_flags: <defaults>
</compile_context>

<pallas_src>
import functools
import math

import jax
import jax.numpy as jnp
from jax.experimental import pallas as pl
from jax.experimental.pallas import tpu as pltpu

_INV_SQRT2 = 0.7071067811865476        # 1/sqrt(2)
_SQRT_2_OVER_PI = 0.7978845608028654   # sqrt(2/pi) for tanh-approx gelu


def _round_up(x: int, m: int) -> int:
    return (x + m - 1) // m * m


def _num_tensorcores() -> int:
    # v7x has 2 TensorCores per chip; v5e/v6e have 1. Fallback: 1 (no shrink).
    try:
        kind = jax.devices()[0].device_kind.lower()
    except Exception:
        return 1
    return 2 if "7" in kind else 1


def _physical_vmem_bytes() -> int:
    try:
        return int(pltpu.get_tpu_info().vmem_capacity_bytes)
    except Exception:
        return 64 * 1024 * 1024   # conservative (v7x per-TC VMEM)


def _head_kernel(x_ref, w1_ref, b1_ref, gamma_ref, beta_ref, w2_ref, b2_ref,
                 y_ref, h_ref, *, eps, inv_h, approx_gelu):
    # x_ref: (TM, Hp); w1: (Hp, Hp); b1/gamma/beta: (1, Hp); w2: (Hp, OUTp);
    # b2: (1, OUTp); y_ref: (TM, OUTp); h_ref: (TM, Hp)

    # Hoisted once-per-tile f32 reads of the small vectors.
    b1 = b1_ref[...].astype(jnp.float32)
    gamma = gamma_ref[...].astype(jnp.float32)
    beta = beta_ref[...].astype(jnp.float32)
    b2 = b2_ref[...].astype(jnp.float32)

    # Cast the x tile to the weight dtype INSIDE the kernel (hidden under the MXU);
    # accumulation in f32.
    x = x_ref[...].astype(w1_ref.dtype)
    h = jnp.dot(x, w1_ref[...], preferred_element_type=jnp.float32) + b1

    if approx_gelu:
        # tanh formulation: transcendental goes to the EUP slot instead of VALU.
        h = 0.5 * h * (1.0 + jnp.tanh(_SQRT_2_OVER_PI * (h + 0.044715 * h * h * h)))
    else:
        # torch-exact erf formulation.
        h = h * 0.5 * (1.0 + jax.lax.erf(h * _INV_SQRT2))

    # LayerNorm over the TRUE hidden width. Padded lanes are exactly zero
    # (W1/b1 zero-padded, gelu(0)=0), so sums over the padded width equal sums
    # over the true width. One-pass variance drops a (TM, Hp) temporary.
    mean = jnp.sum(h, axis=-1, keepdims=True) * inv_h
    mean_sq = jnp.sum(h * h, axis=-1, keepdims=True) * inv_h
    var = jnp.maximum(mean_sq - mean * mean, 0.0)
    h_norm = (h - mean) * jax.lax.rsqrt(var + eps) * gamma + beta
    # gamma/beta zero-padded -> padded lanes of h_norm are exactly zero.

    # Output projection (cast LHS to W2's dtype so bf16 weights hit bf16 MXU rate).
    y = jnp.dot(h_norm.astype(w2_ref.dtype), w2_ref[...],
                preferred_element_type=jnp.float32) + b2

    y_ref[...] = y.astype(y_ref.dtype)
    h_ref[...] = h_norm.astype(h_ref.dtype)


def m3bert_spec_prediction_head(hidden_states, params, *, eps=1e-12, tile_m=512,
                                compute_dtype=None, approx_gelu=False):
    """hidden_states: [B, S, H]. Returns (linear_output [B,S,OUT], hidden [B,S,H]).

    compute_dtype: optional dtype (e.g. jnp.bfloat16) for the matmul operands
    (weights cast once in the wrapper, x tile cast in-kernel); f32 accumulation.
    approx_gelu: use the tanh-approx GELU (EUP-friendly) instead of exact erf.
    """
    B, S, H = hidden_states.shape
    w1, b1, gamma, beta, w2, b2 = (params["w1"], params["b1"], params["gamma"],
                                   params["beta"], params["w2"], params["b2"])
    OUT = w2.shape[1]
    M = B * S
    out_dtype = hidden_states.dtype

    if compute_dtype is not None:
        # One-time weight casts only; activations stay in storage dtype in HBM.
        w1 = w1.astype(compute_dtype)
        w2 = w2.astype(compute_dtype)

    # Lane-dense layouts: pad BOTH hidden and output widths to multiples of 128.
    H_pad = max(128, _round_up(H, 128))
    OUT_pad = max(128, _round_up(OUT, 128))
    if H_pad != H:
        w1 = jnp.pad(w1, ((0, H_pad - H), (0, H_pad - H)))
        b1 = jnp.pad(b1, (0, H_pad - H))
        gamma = jnp.pad(gamma, (0, H_pad - H))   # zero pad -> padded h_norm lanes = 0
        beta = jnp.pad(beta, (0, H_pad - H))
        w2 = jnp.pad(w2, ((0, H_pad - H), (0, 0)))
    if OUT_pad != OUT:
        w2 = jnp.pad(w2, ((0, 0), (0, OUT_pad - OUT)))
        b2 = jnp.pad(b2, (0, OUT_pad - OUT))

    in_sz = jnp.dtype(hidden_states.dtype).itemsize
    w_sz = jnp.dtype(w1.dtype).itemsize
    out_sz = jnp.dtype(out_dtype).itemsize

    ncores = _num_tensorcores()
    phys_vmem = _physical_vmem_bytes()
    budget = int(0.72 * phys_vmem)   # headroom under physical VMEM

    # Row tiling: large tiles; only shrink for megacore (v7x) so each core gets
    # >= 2 steps and DMA overlaps compute. Single-TC chips run the biggest tile.
    tile_m = max(8, _round_up(int(tile_m), 8))
    tile_m = min(tile_m, _round_up(M, 8))
    if ncores > 1:
        min_steps = 2 * ncores
        while tile_m > 8 and pl.cdiv(M, tile_m) < min_steps:
            tile_m = max(8, _round_up(tile_m // 2, 8))

    def _vmem_need(tm):
        return (2 * tm * H_pad * in_sz            # x tile (double-buffered)
                + 2 * tm * H_pad * out_sz         # h output tile
                + 2 * tm * OUT_pad * out_sz       # y output tile
                + H_pad * H_pad * w_sz            # W1 (resident, single-buffered)
                + H_pad * OUT_pad * w_sz          # W2 (resident)
                + (3 * H_pad + OUT_pad) * 4       # b1 / gamma / beta / b2
                + 4 * tm * H_pad * 4              # f32 epilogue temporaries
                + 2 * tm * OUT_pad * 4)

    while tile_m > 8 and _vmem_need(tile_m) > budget:
        tile_m = max(8, _round_up(tile_m // 2, 8))
    # TODO(synk): when H_pad*H_pad*w_sz alone approaches the VMEM budget (H >~ 2-4k),
    # switch to a K-axis grid with an f32 VMEM accumulator instead of resident W1/W2.

    M_pad = _round_up(M, tile_m)
    x2d = hidden_states.reshape(M, H)
    if M_pad != M or H_pad != H:
        x2d = jnp.pad(x2d, ((0, M_pad - M), (0, H_pad - H)))

    b1_2d = b1.reshape(1, H_pad)
    gamma_2d = gamma.reshape(1, H_pad)
    beta_2d = beta.reshape(1, H_pad)
    b2_2d = b2.reshape(1, OUT_pad)

    grid = (M_pad // tile_m,)
    const = lambda i: (0, 0)   # resident whole-array weight / bias blocks

    # VMEM limit: derived from actual footprint, capped below physical VMEM
    # (<= ~56 MiB on v7x, <= 100 MiB on 128 MiB chips).
    vmem_cap = min(phys_vmem - 8 * 1024 * 1024, 100 * 1024 * 1024)
    vmem_limit = int(min(max(int(1.4 * _vmem_need(tile_m)), 32 * 1024 * 1024),
                         vmem_cap))

    cost = pl.CostEstimate(
        flops=2 * M_pad * H_pad * H_pad + 2 * M_pad * H_pad * OUT_pad,
        transcendentals=M_pad * H_pad,   # erf / tanh
        bytes_accessed=(x2d.size * in_sz + w1.size * w_sz + w2.size * w_sz
                        + (3 * H_pad + OUT_pad) * 4
                        + M_pad * OUT_pad * out_sz + M_pad * H_pad * out_sz),
    )

    kernel = functools.partial(_head_kernel, eps=eps, inv_h=1.0 / H,
                               approx_gelu=approx_gelu)

    y2d, h2d = pl.pallas_call(
        kernel,
        out_shape=(jax.ShapeDtypeStruct((M_pad, OUT_pad), out_dtype),
                   jax.ShapeDtypeStruct((M_pad, H_pad), out_dtype)),
        grid_spec=pltpu.PrefetchScalarGridSpec(
            num_scalar_prefetch=0,
            grid=grid,
            in_specs=[
                pl.BlockSpec((tile_m, H_pad), lambda i: (i, 0)),                     # x tile
                pl.BlockSpec((H_pad, H_pad), const, pipeline_mode=pl.Buffered(1)),   # W1
                pl.BlockSpec((1, H_pad), const, pipeline_mode=pl.Buffered(1)),       # b1
                pl.BlockSpec((1, H_pad), const, pipeline_mode=pl.Buffered(1)),       # gamma
                pl.BlockSpec((1, H_pad), const, pipeline_mode=pl.Buffered(1)),       # beta
                pl.BlockSpec((H_pad, OUT_pad), const, pipeline_mode=pl.Buffered(1)), # W2
                pl.BlockSpec((1, OUT_pad), const, pipeline_mode=pl.Buffered(1)),     # b2
            ],
            out_specs=[
                pl.BlockSpec((tile_m, OUT_pad), lambda i: (i, 0)),
                pl.BlockSpec((tile_m, H_pad), lambda i: (i, 0)),
            ],
        ),
        compiler_params=pltpu.CompilerParams(
            dimension_semantics=("parallel",),
            vmem_limit_bytes=vmem_limit),
        cost_estimate=cost,
    )(x2d, w1, b1_2d, gamma_2d, beta_2d, w2, b2_2d)

    y = y2d[:M, :OUT].reshape(B, S, OUT)
    h = h2d[:M, :H].reshape(B, S, H)
    return y, h


def init_params(key, hidden_size, output_dim, downsample_rate):
    out = output_dim * downsample_rate
    k1, k2, k3, k4 = jax.random.split(key, 4)
    scale = 0.02
    return {
        # stored as (in, out) so the kernel does x @ W + b (== torch x @ W.T + b)
        "w1": scale * jax.random.normal(k1, (hidden_size, hidden_size), jnp.float32),
        "b1": scale * jax.random.normal(k2, (hidden_size,), jnp.float32),
        "gamma": jnp.ones((hidden_size,), jnp.float32),
        "beta": jnp.zeros((hidden_size,), jnp.float32),
        "w2": scale * jax.random.normal(k3, (hidden_size, out), jnp.float32),
        "b2": scale * jax.random.normal(k4, (out,), jnp.float32),
    }


if __name__ == "__main__":
    # Small config: hidden_size=32, output_dim=4, downsample_rate=2, gelu act.
    B, S, H = 2, 8, 32
    output_dim, downsample_rate = 4, 2

    key = jax.random.PRNGKey(0)
    kx, kp = jax.random.split(key)
    x = jax.random.normal(kx, (B, S, H), jnp.float32)
    params = init_params(kp, H, output_dim, downsample_rate)

    # f32 path with exact erf GELU (matches the PyTorch module numerics).
    linear_output, hidden = m3bert_spec_prediction_head(x, params, eps=1e-12)
    jax.block_until_ready((linear_output, hidden))

    # Pure-JAX reference (same math, no Pallas).
    def ref(x, p, eps=1e-12):
        h = x @ p["w1"] + p["b1"]
        h = h * 0.5 * (1.0 + jax.lax.erf(h / math.sqrt(2.0)))
        mean = h.mean(-1, keepdims=True)
        var = ((h - mean) ** 2).mean(-1, keepdims=True)
        h = (h - mean) / jnp.sqrt(var + eps) * p["gamma"] + p["beta"]
        return h @ p["w2"] + p["b2"], h

    y_ref, h_ref = ref(x, params)
    assert linear_output.shape == (B, S, output_dim * downsample_rate)
    assert hidden.shape == (B, S, H)
    assert jnp.allclose(linear_output, y_ref, atol=5e-5), "linear_output mismatch"
    assert jnp.allclose(hidden, h_ref, atol=5e-5), "hidden mismatch"

    # bf16 matmul-operand path + EUP-friendly tanh GELU (f32 accumulation in-kernel).
    y_bf16, h_bf16 = m3bert_spec_prediction_head(
        x, params, eps=1e-12, compute_dtype=jnp.bfloat16, approx_gelu=True)
    jax.block_until_ready((y_bf16, h_bf16))
    assert jnp.allclose(y_bf16.astype(jnp.float32), y_ref, atol=1e-1), "bf16 y mismatch"
    assert jnp.allclose(h_bf16.astype(jnp.float32), h_ref, atol=1e-1), "bf16 h mismatch"

    print("KERNEL_OK")
</pallas_src>

<mosaic_0001>
module attributes {stable_mosaic.version = 11 : i64} {
  func.func @_head_kernel(%arg0: i32, %arg1: memref<16x128xf32, #tpu.memory_space<vmem>>, %arg2: memref<128x128xf32, #tpu.memory_space<vmem>>, %arg3: memref<1x128xf32, #tpu.memory_space<vmem>>, %arg4: memref<1x128xf32, #tpu.memory_space<vmem>>, %arg5: memref<1x128xf32, #tpu.memory_space<vmem>>, %arg6: memref<128x128xf32, #tpu.memory_space<vmem>>, %arg7: memref<1x128xf32, #tpu.memory_space<vmem>>, %arg8: memref<16x128xf32, #tpu.memory_space<vmem>>, %arg9: memref<16x128xf32, #tpu.memory_space<vmem>>) attributes {dimension_semantics = [#tpu.dimension_semantics<parallel>], iteration_bounds = array<i64: 1>, scalar_prefetch = 0 : i64, scratch_operands = 0 : i64, tpu.core_type = #tpu.core_type<tc>, window_params = [{transform_indices = @transform_0, window_bounds = array<i64: 16, 128>}, {pipeline_mode = #tpu.pipeline_mode<synchronous>, transform_indices = @transform_1, window_bounds = array<i64: 128, 128>}, {pipeline_mode = #tpu.pipeline_mode<synchronous>, transform_indices = @transform_2, window_bounds = array<i64: 1, 128>}, {pipeline_mode = #tpu.pipeline_mode<synchronous>, transform_indices = @transform_3, window_bounds = array<i64: 1, 128>}, {pipeline_mode = #tpu.pipeline_mode<synchronous>, transform_indices = @transform_4, window_bounds = array<i64: 1, 128>}, {pipeline_mode = #tpu.pipeline_mode<synchronous>, transform_indices = @transform_5, window_bounds = array<i64: 128, 128>}, {pipeline_mode = #tpu.pipeline_mode<synchronous>, transform_indices = @transform_6, window_bounds = array<i64: 1, 128>}, {transform_indices = @transform_7, window_bounds = array<i64: 16, 128>}, {transform_indices = @transform_8, window_bounds = array<i64: 16, 128>}]} {
    %c0 = arith.constant 0 : index
    %c0_0 = arith.constant 0 : index
    %0 = vector.load %arg3[%c0, %c0_0] : memref<1x128xf32, #tpu.memory_space<vmem>>, vector<1x128xf32>
    %c0_1 = arith.constant 0 : index
    %c0_2 = arith.constant 0 : index
    %1 = vector.load %arg4[%c0_1, %c0_2] : memref<1x128xf32, #tpu.memory_space<vmem>>, vector<1x128xf32>
    %c0_3 = arith.constant 0 : index
    %c0_4 = arith.constant 0 : index
    %2 = vector.load %arg5[%c0_3, %c0_4] : memref<1x128xf32, #tpu.memory_space<vmem>>, vector<1x128xf32>
    %c0_5 = arith.constant 0 : index
    %c0_6 = arith.constant 0 : index
    %3 = vector.load %arg7[%c0_5, %c0_6] : memref<1x128xf32, #tpu.memory_space<vmem>>, vector<1x128xf32>
    %c0_7 = arith.constant 0 : index
    %c0_8 = arith.constant 0 : index
    %4 = vector.load %arg1[%c0_7, %c0_8] : memref<16x128xf32, #tpu.memory_space<vmem>>, vector<16x128xf32>
    %c0_9 = arith.constant 0 : index
    %c0_10 = arith.constant 0 : index
    %5 = vector.load %arg2[%c0_9, %c0_10] : memref<128x128xf32, #tpu.memory_space<vmem>>, vector<128x128xf32>
    %cst = arith.constant dense<0.000000e+00> : vector<16x128xf32>
    %6 = tpu.matmul %4, %5, %cst {dimension_numbers = #tpu.dot_dimension_numbers<[1], [0], [0], [1], [0, 0, 1, 1], [], []>} : vector<16x128xf32>, vector<128x128xf32>, vector<16x128xf32> -> vector<16x128xf32>
    %7 = vector.broadcast %0 : vector<1x128xf32> to vector<16x128xf32>
    %8 = arith.addf %6, %7 : vector<16x128xf32>
    %cst_11 = arith.constant 5.000000e-01 : f32
    %9 = vector.broadcast %cst_11 : f32 to vector<16x128xf32>
    %10 = arith.mulf %8, %9 : vector<16x128xf32>
    %cst_12 = arith.constant 0.707106769 : f32
    %11 = vector.broadcast %cst_12 : f32 to vector<16x128xf32>
    %12 = arith.mulf %8, %11 : vector<16x128xf32>
    %13 = math.erf %12 : vector<16x128xf32>
    %cst_13 = arith.constant 1.000000e+00 : f32
    %14 = vector.broadcast %cst_13 : f32 to vector<16x128xf32>
    %15 = arith.addf %14, %13 : vector<16x128xf32>
    %16 = arith.mulf %10, %15 : vector<16x128xf32>
    %cst_14 = arith.constant dense<0.000000e+00> : vector<16xf32>
    %17 = vector.multi_reduction <add>, %16, %cst_14 [1] : vector<16x128xf32> to vector<16xf32>
    %18 = vector.shape_cast %17 : vector<16xf32> to vector<16x1xf32>
    %cst_15 = arith.constant 3.125000e-02 : f32
    %19 = vector.broadcast %cst_15 : f32 to vector<16x1xf32>
    %20 = arith.mulf %18, %19 : vector<16x1xf32>
    %21 = arith.mulf %16, %16 : vector<16x128xf32>
    %cst_16 = arith.constant dense<0.000000e+00> : vector<16xf32>
    %22 = vector.multi_reduction <add>, %21, %cst_16 [1] : vector<16x128xf32> to vector<16xf32>
    %23 = vector.shape_cast %22 : vector<16xf32> to vector<16x1xf32>
    %cst_17 = arith.constant 3.125000e-02 : f32
    %24 = vector.broadcast %cst_17 : f32 to vector<16x1xf32>
    %25 = arith.mulf %23, %24 : vector<16x1xf32>
    %26 = arith.mulf %20, %20 : vector<16x1xf32>
    %27 = arith.subf %25, %26 : vector<16x1xf32>
    %cst_18 = arith.constant 0.000000e+00 : f32
    %28 = vector.broadcast %cst_18 : f32 to vector<16x1xf32>
    %29 = arith.maximumf %27, %28 : vector<16x1xf32>
    %30 = vector.broadcast %20 : vector<16x1xf32> to vector<16x128xf32>
    %31 = arith.subf %16, %30 : vector<16x128xf32>
    %cst_19 = arith.constant 9.99999996E-13 : f32
    %32 = vector.broadcast %cst_19 : f32 to vector<16x1xf32>
    %33 = arith.addf %29, %32 : vector<16x1xf32>
    %34 = math.rsqrt %33 : vector<16x1xf32>
    %35 = vector.broadcast %34 : vector<16x1xf32> to vector<16x128xf32>
    %36 = arith.mulf %31, %35 : vector<16x128xf32>
    %37 = vector.broadcast %1 : vector<1x128xf32> to vector<16x128xf32>
    %38 = arith.mulf %36, %37 : vector<16x128xf32>
    %39 = vector.broadcast %2 : vector<1x128xf32> to vector<16x128xf32>
    %40 = arith.addf %38, %39 : vector<16x128xf32>
    %c0_20 = arith.constant 0 : index
    %c0_21 = arith.constant 0 : index
    %41 = vector.load %arg6[%c0_20, %c0_21] : memref<128x128xf32, #tpu.memory_space<vmem>>, vector<128x128xf32>
    %cst_22 = arith.constant dense<0.000000e+00> : vector<16x128xf32>
    %42 = tpu.matmul %40, %41, %cst_22 {dimension_numbers = #tpu.dot_dimension_numbers<[1], [0], [0], [1], [0, 0, 1, 1], [], []>} : vector<16x128xf32>, vector<128x128xf32>, vector<16x128xf32> -> vector<16x128xf32>
    %43 = vector.broadcast %3 : vector<1x128xf32> to vector<16x128xf32>
    %44 = arith.addf %42, %43 : vector<16x128xf32>
    %c0_23 = arith.constant 0 : index
    %c0_24 = arith.constant 0 : index
    %45 = vector.load %arg8[%c0_23, %c0_24] : memref<16x128xf32, #tpu.memory_space<vmem>>, vector<16x128xf32>
    tpu.vector_store %arg8[%c0_23, %c0_24], %44 {strides = array<i32>} : memref<16x128xf32, #tpu.memory_space<vmem>>, vector<16x128xf32>,
    %c0_25 = arith.constant 0 : index
    %c0_26 = arith.constant 0 : index
    %46 = vector.load %arg9[%c0_25, %c0_26] : memref<16x128xf32, #tpu.memory_space<vmem>>, vector<16x128xf32>
    tpu.vector_store %arg9[%c0_25, %c0_26], %40 {strides = array<i32>} : memref<16x128xf32, #tpu.memory_space<vmem>>, vector<16x128xf32>,
    return
  }
  func.func @transform_0(%arg0: i32) -> (i32, i32) {
    %c0_i32 = arith.constant 0 : i32
    %c0_i32_0 = arith.constant 0 : i32
    return %arg0, %c0_i32 : i32, i32
  }
  func.func @transform_1(%arg0: i32) -> (i32, i32) {
    %c0_i32 = arith.constant 0 : i32
    %c0_i32_0 = arith.constant 0 : i32
    %c0_i32_1 = arith.constant 0 : i32
    return %c0_i32, %c0_i32_0 : i32, i32
  }
  func.func @transform_2(%arg0: i32) -> (i32, i32) {
    %c0_i32 = arith.constant 0 : i32
    %c0_i32_0 = arith.constant 0 : i32
    %c0_i32_1 = arith.constant 0 : i32
    return %c0_i32, %c0_i32_0 : i32, i32
  }
  func.func @transform_3(%arg0: i32) -> (i32, i32) {
    %c0_i32 = arith.constant 0 : i32
    %c0_i32_0 = arith.constant 0 : i32
    %c0_i32_1 = arith.constant 0 : i32
    return %c0_i32, %c0_i32_0 : i32, i32
  }
  func.func @transform_4(%arg0: i32) -> (i32, i32) {
    %c0_i32 = arith.constant 0 : i32
    %c0_i32_0 = arith.constant 0 : i32
    %c0_i32_1 = arith.constant 0 : i32
    return %c0_i32, %c0_i32_0 : i32, i32
  }
  func.func @transform_5(%arg0: i32) -> (i32, i32) {
    %c0_i32 = arith.constant 0 : i32
    %c0_i32_0 = arith.constant 0 : i32
    %c0_i32_1 = arith.constant 0 : i32
    return %c0_i32, %c0_i32_0 : i32, i32
  }
  func.func @transform_6(%arg0: i32) -> (i32, i32) {
    %c0_i32 = arith.constant 0 : i32
    %c0_i32_0 = arith.constant 0 : i32
    %c0_i32_1 = arith.constant 0 : i32
    return %c0_i32, %c0_i32_0 : i32, i32
  }
  func.func @transform_7(%arg0: i32) -> (i32, i32) {
    %c0_i32 = arith.constant 0 : i32
    %c0_i32_0 = arith.constant 0 : i32
    return %arg0, %c0_i32 : i32, i32
  }
  func.func @transform_8(%arg0: i32) -> (i32, i32) {
    %c0_i32 = arith.constant 0 : i32
    %c0_i32_0 = arith.constant 0 : i32
    return %arg0, %c0_i32 : i32, i32
  }
}

</mosaic_0001>

<llo_original>
// kernel: tpu_custom_call.1
$region0: #{tpu_custom_call.1}
  #allocation0 [shape = 'u32[]', space=smem, size = 0x4, offset = 0x4, fixed_abs, tag = 'smem constant byte address 0x4 - core index']
  #allocation1 [shape = 'u32[144,128]{1,0:T(1,128)}', space=vmem, size = 0x12000, scoped, tag = 'internal scratch']
  %s0 = inlined_call_operand.hbm [shape: f32[16,128], index: 0, kind: input, shape index: {}]
  %s1 = inlined_call_operand.hbm [shape: f32[128,128], index: 1, kind: input, shape index: {}]
  %s2 = inlined_call_operand.vmem [shape: f32[1,128], index: 2, kind: input, shape index: {}]
  %s3 = inlined_call_operand.vmem [shape: f32[1,128], index: 3, kind: input, shape index: {}]
  %s4 = inlined_call_operand.vmem [shape: f32[1,128], index: 4, kind: input, shape index: {}]
  %s5 = inlined_call_operand.hbm [shape: f32[128,128], index: 5, kind: input, shape index: {}]
  %s6 = inlined_call_operand.vmem [shape: f32[1,128], index: 6, kind: input, shape index: {}]
  %s7 = inlined_call_operand.hbm [shape: f32[16,128], index: 7, kind: output, shape index: {0}]
  %s8 = inlined_call_operand.hbm [shape: f32[16,128], index: 8, kind: output, shape index: {1}]
  %9 = xla_tuple %s7, %s8
  %s10 = sld [smem:[#allocation0]]
  $region58: #{tpu_custom_call.1} parent=0
    _
  %s12 = ssub.s32 1, %s10
  %s13 = scalar_select 0, %s12, %s10
  $region1: #{tpu_custom_call.1} parent=0
    #allocation2 [shape = 'u8[8192]{0}', space=vmem, size = 0x2000, scoped, tag = 'input window, operand 0, single buffered']
    #allocation3 [shape = 's32[1]{0}', space=sflag, size = 0x4, scoped, tag = 'scoped memory for tpu_custom_call.1']
    #allocation4 [shape = 's32[1]{0}', space=sflag, size = 0x4, scoped, tag = 'scoped memory for tpu_custom_call.1']
    #allocation5 [shape = 'u8[65536]{0}', space=vmem, size = 0x10000, scoped, tag = 'input window, operand 1, single buffered']
    #allocation6 [shape = 's32[1]{0}', space=sflag, size = 0x4, scoped, tag = 'scoped memory for tpu_custom_call.1']
    #allocation7 [shape = 'u8[65536]{0}', space=vmem, size = 0x10000, scoped, tag = 'input window, operand 5, single buffered']
    #allocation8 [shape = 'u8[8192]{0}', space=vmem, size = 0x2000, scoped, tag = 'output window, operand 0, single buffered']
    #allocation9 [shape = 'u8[8192]{0}', space=vmem, size = 0x2000, scoped, tag = 'output window, operand 1, single buffered']
    #allocation10 [shape = 's32[1]{0}', space=sflag, size = 0x4, scoped, tag = 'scoped memory for tpu_custom_call.1']
    %14 = vsyncpa [#allocation3], 0
    %15 = vsyncpa [#allocation6], 0
    %16 = vsyncpa [#allocation4], 0
    %17 = vsyncpa [#allocation10], 0
    // Predicated region
    $region2: #{tpu_custom_call.1} parent=1 // pred_check
      _
    $region3: #{tpu_custom_call.1} parent=1 // pred_check_branch
      %19 = sbr.rel (0) target = $region5
    $region4: #{tpu_custom_call.1} parent=1 // pred_region
      %s21 = ssub.s32 256, 256
      %22 = vsyncadd [#allocation3], %s21
      %s23 = sshll.u32 [#allocation2], 4
      %s24 = int_to_ptr.vmem [resolvable:$true] %s23
      %29 = dma.hbm_to_vmem [thread:$0]  %s0, 256, %s24, [#allocation3], 128, 128, 8
    $region5: #{tpu_custom_call.1} parent=1 // pred_fallthru
      _
    // Predicated region
    $region6: #{tpu_custom_call.1} parent=1 // pred_check
      _
    $region7: #{tpu_custom_call.1} parent=1 // pred_check_branch
      %31 = sbr.rel (0) target = $region9
    $region8: #{tpu_custom_call.1} parent=1 // pred_region
      %s33 = ssub.s32 2048, 2048
      %34 = vsyncadd [#allocation6], %s33
      %s35 = sshll.u32 [#allocation5], 4
      %s36 = int_to_ptr.vmem [resolvable:$true] %s35
      %41 = dma.hbm_to_vmem [thread:$0]  %s1, 2048, %s36, [#allocation6], 128, 128, 8
    $region9: #{tpu_custom_call.1} parent=1 // pred_fallthru
      _
    // Predicated region
    $region10: #{tpu_custom_call.1} parent=1 // pred_check
      _
    $region11: #{tpu_custom_call.1} parent=1 // pred_check_branch
      %43 = sbr.rel (0) target = $region13
    $region12: #{tpu_custom_call.1} parent=1 // pred_region
      _
    $region13: #{tpu_custom_call.1} parent=1 // pred_fallthru
      _
    // Predicated region
    $region14: #{tpu_custom_call.1} parent=1 // pred_check
      _
    $region15: #{tpu_custom_call.1} parent=1 // pred_check_branch
      %45 = sbr.rel (0) target = $region17
    $region16: #{tpu_custom_call.1} parent=1 // pred_region
      _
    $region17: #{tpu_custom_call.1} parent=1 // pred_fallthru
      _
    // Predicated region
    $region18: #{tpu_custom_call.1} parent=1 // pred_check
      _
    $region19: #{tpu_custom_call.1} parent=1 // pred_check_branch
      %47 = sbr.rel (0) target = $region21
    $region20: #{tpu_custom_call.1} parent=1 // pred_region
      _
    $region21: #{tpu_custom_call.1} parent=1 // pred_fallthru
      _
    // Predicated region
    $region22: #{tpu_custom_call.1} parent=1 // pred_check
      _
    $region23: #{tpu_custom_call.1} parent=1 // pred_check_branch
      %49 = sbr.rel (0) target = $region25
    $region24: #{tpu_custom_call.1} parent=1 // pred_region
      %s51 = ssub.s32 2048, 2048
      %52 = vsyncadd [#allocation6], %s51
      %s53 = sshll.u32 [#allocation7], 4
      %s54 = int_to_ptr.vmem [resolvable:$true] %s53
      %59 = dma.hbm_to_vmem [thread:$0]  %s5, 2048, %s54, [#allocation6], 128, 128, 8
    $region25: #{tpu_custom_call.1} parent=1 // pred_fallthru
      _
    // Predicated region
    $region26: #{tpu_custom_call.1} parent=1 // pred_check
      _
    $region27: #{tpu_custom_call.1} parent=1 // pred_check_branch
      %61 = sbr.rel (0) target = $region29
    $region28: #{tpu_custom_call.1} parent=1 // pred_region
      _
    $region29: #{tpu_custom_call.1} parent=1 // pred_fallthru
      _
    // Predicated region
    $region30: #{tpu_custom_call.1} parent=1 // pred_check
      _
    $region31: #{tpu_custom_call.1} parent=1 // pred_check_branch
      %63 = sbr.rel (0) target = $region33
    $region32: #{tpu_custom_call.1} parent=1 // pred_region
      %64 = dma.done [#allocation3], 256
    $region33: #{tpu_custom_call.1} parent=1 // pred_fallthru
      _
    // Predicated region
    $region34: #{tpu_custom_call.1} parent=1 // pred_check
      _
    $region35: #{tpu_custom_call.1} parent=1 // pred_check_branch
      %66 = sbr.rel (0) target = $region37
    $region36: #{tpu_custom_call.1} parent=1 // pred_region
      %67 = dma.done [#allocation6], 2048
    $region37: #{tpu_custom_call.1} parent=1 // pred_fallthru
      _
    // Predicated region
    $region38: #{tpu_custom_call.1} parent=1 // pred_check
      _
    $region39: #{tpu_custom_call.1} parent=1 // pred_check_branch
      %69 = sbr.rel (0) target = $region41
    $region40: #{tpu_custom_call.1} parent=1 // pred_region
      %70 = dma.done [#allocation6], 2048
    $region41: #{tpu_custom_call.1} parent=1 // pred_fallthru
      _
    %v71 = vld [vmem:[%s2] sm:$0x1]
    %v72 = vld [vmem:[%s3] sm:$0x1]
    %v73 = vld [vmem:[%s4] sm:$0x1]
    %v74 = vld [vmem:[%s6] sm:$0x1]
    %v75 = vld [vmem:[#allocation2] sm:$0xff]
    %v76 = vld [vmem:[#allocation2 + $0x8] sm:$0xff]
    %v77 = vld [vmem:[#allocation5] sm:$0xff]
    %v78 = vld [vmem:[#allocation5 + $0x8] sm:$0xff]
    %v79 = vld [vmem:[#allocation5 + $0x10] sm:$0xff]
    %v80 = vld [vmem:[#allocation5 + $0x18] sm:$0xff]
    %v81 = vld [vmem:[#allocation5 + $0x20] sm:$0xff]
    %v82 = vld [vmem:[#allocation5 + $0x28] sm:$0xff]
    %v83 = vld [vmem:[#allocation5 + $0x30] sm:$0xff]
    %v84 = vld [vmem:[#allocation5 + $0x38] sm:$0xff]
    %v85 = vld [vmem:[#allocation5 + $0x40] sm:$0xff]
    %v86 = vld [vmem:[#allocation5 + $0x48] sm:$0xff]
    %v87 = vld [vmem:[#allocation5 + $0x50] sm:$0xff]
    %v88 = vld [vmem:[#allocation5 + $0x58] sm:$0xff]
    %v89 = vld [vmem:[#allocation5 + $0x60] sm:$0xff]
    %v90 = vld [vmem:[#allocation5 + $0x68] sm:$0xff]
    %v91 = vld [vmem:[#allocation5 + $0x70] sm:$0xff]
    %v92 = vld [vmem:[#allocation5 + $0x78] sm:$0xff]
    %v94 = vlaneseq
    %v95 = vshrl.u32 %v94, 7
    %v96 = vsub.s32 0, %v95
    %v97 = vrot.slane %v71, %v96
    %99 = vmatprep.subr.mxu0 0.0
    %100 = vmatpush1.msra.mxu0 %v77
    %101 = vmatprep.subr.mxu0 0.0
    %102 = vmatpush1.msra.mxu0 %v78
    %103 = vmatprep.subr.mxu0 0.0
    %104 = vmatpush1.msra.mxu0 %v79
    %105 = vmatprep.subr.mxu0 0.0
    %106 = vmatpush1.msra.mxu0 %v80
    %107 = vmatprep.subr.mxu0 0.0
    %108 = vmatpush1.msra.mxu0 %v81
    %109 = vmatprep.subr.mxu0 0.0
    %110 = vmatpush1.msra.mxu0 %v82
    %111 = vmatprep.subr.mxu0 0.0
    %112 = vmatpush1.msra.mxu0 %v83
    %113 = vmatprep.subr.mxu0 0.0
    %114 = vmatpush1.msra.mxu0 %v84
    %115 = vmatprep.subr.mxu0 0.0
    %116 = vmatpush1.msra.mxu0 %v85
    %117 = vmatprep.subr.mxu0 0.0
    %118 = vmatpush1.msra.mxu0 %v86
    %119 = vmatprep.subr.mxu0 0.0
    %120 = vmatpush1.msra.mxu0 %v87
    %121 = vmatprep.subr.mxu0 0.0
    %122 = vmatpush1.msra.mxu0 %v88
    %123 = vmatprep.subr.mxu0 0.0
    %124 = vmatpush1.msra.mxu0 %v89
    %125 = vmatprep.subr.mxu0 0.0
    %126 = vmatpush1.msra.mxu0 %v90
    %127 = vmatprep.subr.mxu0 0.0
    %128 = vmatpush1.msra.mxu0 %v91
    %129 = vmatprep.subr.mxu0 0.0
    %130 = vmatpush1.msra.mxu0 %v92
    %131 = vmatprep.subr.mxu0 0.0
    %132 = vmatpush1.msra.mxu0 0.0
    %133 = vmatprep.subr.mxu0 0.0
    %134 = vmatpush1.msra.mxu0 0.0
    %135 = vmatprep.subr.mxu0 0.0
    %136 = vmatpush1.msra.mxu0 0.0
    %137 = vmatprep.subr.mxu0 0.0
    %138 = vmatpush1.msra.mxu0 0.0
    %139 = vmatprep.subr.mxu0 0.0
    %140 = vmatpush1.msra.mxu0 0.0
    %141 = vmatprep.subr.mxu0 0.0
    %142 = vmatpush1.msra.mxu0 0.0
    %143 = vmatprep.subr.mxu0 0.0
    %144 = vmatpush1.msra.mxu0 0.0
    %145 = vmatprep.subr.mxu0 0.0
    %146 = vmatpush1.msra.mxu0 0.0
    %147 = vmatprep.subr.mxu0 0.0
    %148 = vmatpush1.msra.mxu0 0.0
    %149 = vmatprep.subr.mxu0 0.0
    %150 = vmatpush1.msra.mxu0 0.0
    %151 = vmatprep.subr.mxu0 0.0
    %152 = vmatpush1.msra.mxu0 0.0
    %153 = vmatprep.subr.mxu0 0.0
    %154 = vmatpush1.msra.mxu0 0.0
    %155 = vmatprep.subr.mxu0 0.0
    %156 = vmatpush1.msra.mxu0 0.0
    %157 = vmatprep.subr.mxu0 0.0
    %158 = vmatpush1.msra.mxu0 0.0
    %159 = vmatprep.subr.mxu0 0.0
    %160 = vmatpush1.msra.mxu0 0.0
    %161 = vmatprep.subr.mxu0 0.0
    %162 = vmatpush1.msra.mxu0 0.0
    %163 = vmatprep.mubr.f32.mxu0 0.0
    %164 = vmatmul.mubr.f32.gmra.mrb[0].mxu0 %v75
    %v165 = vpop.f32.mrb[0].mxu0
    %v166 = vadd.f32 %v97, %v165
    %v167 = vpop.f32.mrb[0].mxu0
    %168 = vmatprep.mubr.f32.mxu0 0.0
    %169 = vmatmul.mubr.f32.gmra.mrb[0].mxu0 %v76
    %v170 = vpop.f32.mrb[0].mxu0
    %v171 = vadd.f32 %v97, %v170
    %v172 = vpop.f32.mrb[0].mxu0
    %173 = vdwg.mxu0
    %v174 = vmul.f32 %v166, 0.5
    %v175 = vmul.f32 %v171, 0.5
    %v176 = vmul.f32 %v166, 0.70710677
    %v177 = vmul.f32 %v171, 0.70710677
    %v178 = verf.f32.pop %v176
    %v179 = verf.f32.pop %v177
    %v180 = vadd.f32 %v178, 1.0
    %v181 = vadd.f32 %v179, 1.0
    %v182 = vmul.f32 %v174, %v180
    %v183 = vmul.f32 %v175, %v181
    %184 = vadd.xlane.f32.xlu0 %v182
    %v185 = vpop.xlane.xlu0 %184
    %186 = vadd.xlane.f32.xlu0 %v183
    %v187 = vpop.xlane.xlu0 %186
    %v188 = vmul.f32 %v185, 0.03125
    %v189 = vmul.f32 %v187, 0.03125
    %v190 = vmul.f32 %v182, %v182
    %v191 = vmul.f32 %v183, %v183
    %192 = vadd.xlane.f32.xlu0 %v190
    %v193 = vpop.xlane.xlu0 %192
    %194 = vadd.xlane.f32.xlu0 %v191
    %v195 = vpop.xlane.xlu0 %194
    %v196 = vmul.f32 %v193, 0.03125
    %v197 = vmul.f32 %v195, 0.03125
    %v198 = vmul.f32 %v188, %v188
    %v199 = vmul.f32 %v189, %v189
    %v200 = vsub.f32 %v196, %v198
    %v201 = vsub.f32 %v197, %v199
    %v202 = vmax.f32 %v200, 0.0
    %v203 = vmax.f32 %v201, 0.0
    %v204 = vsub.f32 %v182, %v188
    %v205 = vsub.f32 %v183, %v189
    %v206 = vadd.f32 %v202, 1e-12
    %v207 = vadd.f32 %v203, 1e-12
    %v208 = vrsqrt.pop %v206
    %v209 = vrsqrt.pop %v207
    %v210 = vmul.f32 %v204, %v208
    %v211 = vmul.f32 %v205, %v209
    %v213 = vlaneseq
    %v214 = vshrl.u32 %v213, 7
    %v215 = vsub.s32 0, %v214
    %v216 = vrot.slane %v72, %v215
    %v218 = vmul.f32 %v210, %v216
    %v219 = vmul.f32 %v211, %v216
    %v221 = vlaneseq
    %v222 = vshrl.u32 %v221, 7
    %v223 = vsub.s32 0, %v222
    %v224 = vrot.slane %v73, %v223
    %v226 = vadd.f32 %v218, %v224
    %v227 = vadd.f32 %v219, %v224
    %v228 = vld [vmem:[#allocation7] sm:$0xff]
    %v229 = vld [vmem:[#allocation7 + $0x8] sm:$0xff]
    %v230 = vld [vmem:[#allocation7 + $0x10] sm:$0xff]
    %v231 = vld [vmem:[#allocation7 + $0x18] sm:$0xff]
    %v232 = vld [vmem:[#allocation7 + $0x20] sm:$0xff]
    %v233 = vld [vmem:[#allocation7 + $0x28] sm:$0xff]
    %v234 = vld [vmem:[#allocation7 + $0x30] sm:$0xff]
    %v235 = vld [vmem:[#allocation7 + $0x38] sm:$0xff]
    %v236 = vld [vmem:[#allocation7 + $0x40] sm:$0xff]
    %v237 = vld [vmem:[#allocation7 + $0x48] sm:$0xff]
    %v238 = vld [vmem:[#allocation7 + $0x50] sm:$0xff]
    %v239 = vld [vmem:[#allocation7 + $0x58] sm:$0xff]
    %v240 = vld [vmem:[#allocation7 + $0x60] sm:$0xff]
    %v241 = vld [vmem:[#allocation7 + $0x68] sm:$0xff]
    %v242 = vld [vmem:[#allocation7 + $0x70] sm:$0xff]
    %v243 = vld [vmem:[#allocation7 + $0x78] sm:$0xff]
    %v245 = vlaneseq
    %v246 = vshrl.u32 %v245, 7
    %v247 = vsub.s32 0, %v246
    %v248 = vrot.slane %v74, %v247
    %250 = vmatprep.subr.mxu0 0.0
    %251 = vmatpush1.msra.mxu0 %v228
    %252 = vmatprep.subr.mxu0 0.0
    %253 = vmatpush1.msra.mxu0 %v229
    %254 = vmatprep.subr.mxu0 0.0
    %255 = vmatpush1.msra.mxu0 %v230
    %256 = vmatprep.subr.mxu0 0.0
    %257 = vmatpush1.msra.mxu0 %v231
    %258 = vmatprep.subr.mxu0 0.0
    %259 = vmatpush1.msra.mxu0 %v232
    %260 = vmatprep.subr.mxu0 0.0
    %261 = vmatpush1.msra.mxu0 %v233
    %262 = vmatprep.subr.mxu0 0.0
    %263 = vmatpush1.msra.mxu0 %v234
    %264 = vmatprep.subr.mxu0 0.0
    %265 = vmatpush1.msra.mxu0 %v235
    %266 = vmatprep.subr.mxu0 0.0
    %267 = vmatpush1.msra.mxu0 %v236
    %268 = vmatprep.subr.mxu0 0.0
    %269 = vmatpush1.msra.mxu0 %v237
    %270 = vmatprep.subr.mxu0 0.0
    %271 = vmatpush1.msra.mxu0 %v238
    %272 = vmatprep.subr.mxu0 0.0
    %273 = vmatpush1.msra.mxu0 %v239
    %274 = vmatprep.subr.mxu0 0.0
    %275 = vmatpush1.msra.mxu0 %v240
    %276 = vmatprep.subr.mxu0 0.0
    %277 = vmatpush1.msra.mxu0 %v241
    %278 = vmatprep.subr.mxu0 0.0
    %279 = vmatpush1.msra.mxu0 %v242
    %280 = vmatprep.subr.mxu0 0.0
    %281 = vmatpush1.msra.mxu0 %v243
    %282 = vmatprep.subr.mxu0 0.0
    %283 = vmatpush1.msra.mxu0 0.0
    %284 = vmatprep.subr.mxu0 0.0
    %285 = vmatpush1.msra.mxu0 0.0
    %286 = vmatprep.subr.mxu0 0.0
    %287 = vmatpush1.msra.mxu0 0.0
    %288 = vmatprep.subr.mxu0 0.0
    %289 = vmatpush1.msra.mxu0 0.0
    %290 = vmatprep.subr.mxu0 0.0
    %291 = vmatpush1.msra.mxu0 0.0
    %292 = vmatprep.subr.mxu0 0.0
    %293 = vmatpush1.msra.mxu0 0.0
    %294 = vmatprep.subr.mxu0 0.0
    %295 = vmatpush1.msra.mxu0 0.0
    %296 = vmatprep.subr.mxu0 0.0
    %297 = vmatpush1.msra.mxu0 0.0
    %298 = vmatprep.subr.mxu0 0.0
    %299 = vmatpush1.msra.mxu0 0.0
    %300 = vmatprep.subr.mxu0 0.0
    %301 = vmatpush1.msra.mxu0 0.0
    %302 = vmatprep.subr.mxu0 0.0
    %303 = vmatpush1.msra.mxu0 0.0
    %304 = vmatprep.subr.mxu0 0.0
    %305 = vmatpush1.msra.mxu0 0.0
    %306 = vmatprep.subr.mxu0 0.0
    %307 = vmatpush1.msra.mxu0 0.0
    %308 = vmatprep.subr.mxu0 0.0
    %309 = vmatpush1.msra.mxu0 0.0
    %310 = vmatprep.subr.mxu0 0.0
    %311 = vmatpush1.msra.mxu0 0.0
    %312 = vmatprep.subr.mxu0 0.0
    %313 = vmatpush1.msra.mxu0 0.0
    %314 = vmatprep.mubr.f32.mxu0 0.0
    %315 = vmatmul.mubr.f32.gmra.mrb[0].mxu0 %v226
    %v316 = vpop.f32.mrb[0].mxu0
    %v317 = vadd.f32 %v248, %v316
    %v318 = vpop.f32.mrb[0].mxu0
    %319 = vmatprep.mubr.f32.mxu0 0.0
    %320 = vmatmul.mubr.f32.gmra.mrb[0].mxu0 %v227
    %v321 = vpop.f32.mrb[0].mxu0
    %v322 = vadd.f32 %v248, %v321
    %v323 = vpop.f32.mrb[0].mxu0
    %324 = vdwg.mxu0
    %325 = vst [vmem:[#allocation8] sm:$0xff] %v317
    %326 = vst [vmem:[#allocation8 + $0x8] sm:$0xff] %v322
    %327 = vst [vmem:[#allocation9] sm:$0xff] %v226
    %328 = vst [vmem:[#allocation9 + $0x8] sm:$0xff] %v227
    // Predicated region
    $region42: #{tpu_custom_call.1} parent=1 // pred_check
      _
    $region43: #{tpu_custom_call.1} parent=1 // pred_check_branch
      %330 = sbr.rel (0) target = $region45
    $region44: #{tpu_custom_call.1} parent=1 // pred_region
      %s332 = ssub.s32 256, 256
      %333 = vsyncadd [#allocation4], %s332
      %s334 = sshll.u32 [#allocation8], 4
      %s335 = int_to_ptr.vmem [resolvable:$true] %s334
      %340 = dma.vmem_to_hbm [thread:$0]  %s335, 256, %s7, [#allocation4], 128, 128, 8
    $region45: #{tpu_custom_call.1} parent=1 // pred_fallthru
      _
    // Predicated region
    $region46: #{tpu_custom_call.1} parent=1 // pred_check
      _
    $region47: #{tpu_custom_call.1} parent=1 // pred_check_branch
      %342 = sbr.rel (0) target = $region49
    $region48: #{tpu_custom_call.1} parent=1 // pred_region
      %s344 = ssub.s32 256, 256
      %345 = vsyncadd [#allocation10], %s344
      %s346 = sshll.u32 [#allocation9], 4
      %s347 = int_to_ptr.vmem [resolvable:$true] %s346
      %352 = dma.vmem_to_hbm [thread:$0]  %s347, 256, %s8, [#allocation10], 128, 128, 8
    $region49: #{tpu_custom_call.1} parent=1 // pred_fallthru
      _
    // Predicated region
    $region50: #{tpu_custom_call.1} parent=1 // pred_check
      _
    $region51: #{tpu_custom_call.1} parent=1 // pred_check_branch
      %354 = sbr.rel (0) target = $region53
    $region52: #{tpu_custom_call.1} parent=1 // pred_region
      %355 = dma.done [#allocation4], 256
    $region53: #{tpu_custom_call.1} parent=1 // pred_fallthru
      _
    // Predicated region
    $region54: #{tpu_custom_call.1} parent=1 // pred_check
      _
    $region55: #{tpu_custom_call.1} parent=1 // pred_check_branch
      %357 = sbr.rel (0) target = $region57
    $region56: #{tpu_custom_call.1} parent=1 // pred_region
      %358 = dma.done [#allocation10], 256
    $region57: #{tpu_custom_call.1} parent=1 // pred_fallthru
      _
    %359 = vsyncpa [#allocation3], 1
    %360 = vsyncpa [#allocation6], 1
    %361 = vsyncpa [#allocation4], 1
    %362 = vsyncpa [#allocation10], 1

</llo_original>
